<compile_context>
chip_gen: v6e
topology: v6e:2x2x1
jax: 0.10.0
libtpu: 0.0.40
codegen_flags: <defaults>
</compile_context>

<pallas_src>
import functools
import math

import jax
import jax.numpy as jnp
from jax.experimental import pallas as pl
from jax.experimental.pallas import tpu as pltpu

EPS = 1e-6

# Below this many input bytes the pallas_call launch + pipeline ramp dominates;
# a plain-JAX (XLA-fused) layernorm wins there at zero cost to large shapes.
_SMALL_TENSOR_BYTES = 1 << 20


# --------------------------- chip-aware budgets -----------------------------

def _tpu_config():
    """Return (max_tile_bytes, vmem_limit_bytes, n_tensorcores).

    v5e / v6e: 128 MiB VMEM, 1 TensorCore  -> big tiles, serial grid is fine.
    v7x      :  64 MiB VMEM, 2 TensorCores -> smaller tiles, balanced 2-way grid.
    """
    vmem_cap = 128 * 1024 * 1024
    n_tc = 1
    try:
        vmem_cap = int(pltpu.get_tpu_info().vmem_capacity_bytes)
    except Exception:  # non-TPU backend / interpret mode — keep safe defaults
        pass
    try:
        if "v7" in jax.devices()[0].device_kind.lower():
            n_tc = 2
    except Exception:
        pass
    if vmem_cap <= 64 * 1024 * 1024:
        # v7x-class part: tight VMEM, 2 TensorCores per chip.
        return 4 * 1024 * 1024, 40 * 1024 * 1024, max(n_tc, 2)
    # v5e / v6e-class part: 128 MiB VMEM, pure streaming kernel -> bigger tiles.
    return 12 * 1024 * 1024, 96 * 1024 * 1024, n_tc


# ----------------------------- Pallas kernel -------------------------------

def _layernorm_kernel(x_ref, o_ref, *, alpha: float, bias: float, eps: float):
    """Row-wise LayerNormalization (torch semantics: unbiased std, eps on std).

    x_ref, o_ref : VMEM tiles of shape (block_rows, d_model).
    alpha / bias / eps are compile-time constants (torch.ones(1)/zeros(1)).
    The tile is re-read per pass so no full f32 upcast copy stays live across
    the kernel (extra vld passes hide under the HBM-bound DMA).
    """
    d = x_ref.shape[-1]

    # Pass 1: mean (upcast inside the reduction).
    mean = jnp.sum(x_ref[...].astype(jnp.float32), axis=-1, keepdims=True)
    mean = mean * jnp.float32(1.0 / d)

    # Pass 2: unbiased (N-1) variance about the mean.  Two-pass form avoids
    # the catastrophic cancellation of E[x^2] - E[x]^2.
    centered = x_ref[...].astype(jnp.float32) - mean
    if d > 1:
        var = jnp.sum(centered * centered, axis=-1, keepdims=True)
        var = var * jnp.float32(1.0 / (d - 1))
    else:
        # torch.std with one element (ddof=1) is NaN; we return 0 instead.
        var = jnp.zeros_like(mean)
    std = jnp.sqrt(var)

    # Exact divide: it only touches the (rows, 1) std column (essentially free)
    # and keeps tighter parity with torch than the EUP approx reciprocal.
    inv = jnp.float32(1.0) / (std + jnp.float32(eps))

    # Pass 3: normalize (re-read the tile rather than holding `centered` live).
    y = (x_ref[...].astype(jnp.float32) - mean) * inv
    if alpha != 1.0:
        y = y * jnp.float32(alpha)
    if bias != 0.0:
        y = y + jnp.float32(bias)
    o_ref[...] = y.astype(o_ref.dtype)


# ----------------------------- tiling choice --------------------------------

def _choose_block_rows(rows: int, d_model: int, itemsize: int,
                       max_tile_bytes: int, n_tc: int) -> int:
    """Largest pack-aligned row tile within the per-buffer VMEM budget, with a
    megacore-balanced step count on 2-TensorCore parts."""
    # Native sublane pack: 8 for f32, 16 for bf16, 32 for int8/fp8.
    pack = max(8, 32 // max(itemsize, 1))
    # Pipeline buffers hold the tile in the *source* dtype (dtype-aware budget);
    # the f32 compute temporaries are covered by the scoped-VMEM headroom.
    bytes_per_row = max(d_model * itemsize, 1)
    block_rows = (max_tile_bytes // bytes_per_row) // pack * pack
    block_rows = max(pack, min(4096, block_rows))

    n_steps = pl.cdiv(rows, block_rows)
    if n_tc > 1:
        # >= 2 steps per TensorCore when the row count allows it, and a step
        # count that is a multiple of the core count so the megacore split
        # balances (no 2:1 core-load skew).
        n_steps = max(n_steps, min(2 * n_tc, pl.cdiv(rows, pack)))
        n_steps = pl.cdiv(n_steps, n_tc) * n_tc
    # Re-balance into near-equal, pack-aligned tiles (no tiny ragged trailer).
    block_rows = pl.cdiv(pl.cdiv(rows, n_steps), pack) * pack
    return max(pack, block_rows)


# ------------------------------ wrapper --------------------------------------

def layer_normalization(x: jax.Array, alpha: float = 1.0, bias: float = 0.0,
                        *, eps: float = EPS, block_rows: int | None = None,
                        use_pallas: bool | None = None) -> jax.Array:
    """Apply LayerNormalization (torch semantics) over the last axis of x.

    For d_model that is not a multiple of 128 the output stores are
    lane-masked (functionally fine); real transformer widths are lane-dense.
    use_pallas=None auto-falls back to plain JAX for tiny tensors.
    """
    orig_shape = x.shape
    d_model = orig_shape[-1]
    rows = math.prod(orig_shape[:-1]) if len(orig_shape) > 1 else 1

    if use_pallas is None:
        use_pallas = rows * d_model * x.dtype.itemsize >= _SMALL_TENSOR_BYTES
    if not use_pallas:
        xf = x.astype(jnp.float32)
        mean = jnp.mean(xf, axis=-1, keepdims=True)
        if d_model > 1:
            std = jnp.sqrt(jnp.var(xf, axis=-1, keepdims=True, ddof=1))
        else:
            std = jnp.zeros_like(mean)
        return (alpha * (xf - mean) / (std + eps) + bias).astype(x.dtype)

    x2 = x.reshape(rows, d_model)  # trailing-dim collapse: no HBM copy

    max_tile_bytes, vmem_limit_bytes, n_tc = _tpu_config()
    if block_rows is None:
        block_rows = _choose_block_rows(rows, d_model, x.dtype.itemsize,
                                        max_tile_bytes, n_tc)
    grid = (pl.cdiv(rows, block_rows),)  # ragged last block handled by Pallas

    kernel = functools.partial(_layernorm_kernel, alpha=float(alpha),
                               bias=float(bias), eps=float(eps))

    out = pl.pallas_call(
        kernel,
        out_shape=jax.ShapeDtypeStruct((rows, d_model), x.dtype),
        grid=grid,
        in_specs=[pl.BlockSpec((block_rows, d_model), lambda i: (i, 0))],
        out_specs=pl.BlockSpec((block_rows, d_model), lambda i: (i, 0)),
        compiler_params=pltpu.CompilerParams(
            dimension_semantics=("parallel",),
            vmem_limit_bytes=vmem_limit_bytes),
    )(x2)

    return out.reshape(orig_shape)


# ------------------------------- Decoder -----------------------------------

class Decoder:
    """JAX port of mark_transformer.Decoder.

    `layers` is a sequence of callables layer(x, encoder_output, src_mask,
    tgt_mask) -> x, mirroring the nn.ModuleList passed to the PyTorch module.
    The final LayerNormalization is the Pallas kernel above.
    """

    def __init__(self, layers, *, use_pallas: bool | None = None):
        self.layers = tuple(layers)
        # Matches torch.ones(1) / torch.zeros(1) parameters.
        self.alpha = 1.0
        self.bias = 0.0
        self.use_pallas = use_pallas

    def __call__(self, x, encoder_output, src_mask, tgt_mask):
        # TODO(synk): DecoderBlock internals are not defined in the
        # mark_transformer.py snippet; layers are applied as plain-JAX glue.
        # TODO(synk): the biggest remaining win is fusing this LayerNorm into
        # the last decoder layer's epilogue (removes a full HBM round trip),
        # but the layers are opaque callables here.
        for layer in self.layers:
            x = layer(x, encoder_output, src_mask, tgt_mask)
        return layer_normalization(x, self.alpha, self.bias,
                                   use_pallas=self.use_pallas)


# ------------------------------ reference ----------------------------------

def _layernorm_ref(x, alpha, bias, eps=EPS):
    x = x.astype(jnp.float32)
    mean = jnp.mean(x, axis=-1, keepdims=True)
    std = jnp.sqrt(jnp.var(x, axis=-1, keepdims=True, ddof=1))  # torch.std
    return alpha * (x - mean) / (std + eps) + bias


# --------------------------------- main -------------------------------------

if __name__ == "__main__":
    key = jax.random.PRNGKey(0)
    batch, seq, d_model = 2, 8, 32

    kx, ke = jax.random.split(key)
    x = jax.random.normal(kx, (batch, seq, d_model), dtype=jnp.float32)
    encoder_output = jax.random.normal(ke, (batch, seq, d_model),
                                       dtype=jnp.float32)
    src_mask = jnp.ones((batch, 1, 1, seq), dtype=jnp.float32)
    tgt_mask = jnp.ones((batch, 1, seq, seq), dtype=jnp.float32)

    # Simple stand-in decoder layers (the real DecoderBlocks live outside this
    # file); they only exercise the Decoder loop plumbing.
    def make_layer(scale):
        def layer(x, enc, sm, tm):
            return x + scale * enc
        return layer

    # Force the Pallas path so the kernel itself is exercised at demo size.
    decoder = Decoder([make_layer(0.5), make_layer(0.25)], use_pallas=True)

    out = decoder(x, encoder_output, src_mask, tgt_mask)
    out = jax.block_until_ready(out)

    # Correctness check against a pure-JAX reference of the same forward pass.
    x_after = x + 0.5 * encoder_output + 0.25 * encoder_output
    ref = _layernorm_ref(x_after, decoder.alpha, decoder.bias)
    assert out.shape == (batch, seq, d_model)
    assert jnp.allclose(out, ref, atol=1e-3, rtol=1e-3), "mismatch vs reference"

    # Also exercise the small-tensor plain-JAX fallback path.
    out_fb = layer_normalization(x_after, decoder.alpha, decoder.bias,
                                 use_pallas=False)
    out_fb = jax.block_until_ready(out_fb)
    assert jnp.allclose(out_fb, ref, atol=1e-3, rtol=1e-3), "fallback mismatch"

    print("KERNEL_OK")
</pallas_src>

<mosaic_0001>
module attributes {stable_mosaic.version = 11 : i64} {
  func.func @_layernorm_kernel(%arg0: i32, %arg1: memref<16x32xf32, #tpu.memory_space<vmem>>, %arg2: memref<16x32xf32, #tpu.memory_space<vmem>>) attributes {dimension_semantics = [#tpu.dimension_semantics<parallel>], iteration_bounds = array<i64: 1>, scalar_prefetch = 0 : i64, scratch_operands = 0 : i64, tpu.core_type = #tpu.core_type<tc>, window_params = [{transform_indices = @transform_0, window_bounds = array<i64: 16, 32>}, {transform_indices = @transform_1, window_bounds = array<i64: 16, 32>}]} {
    %c0 = arith.constant 0 : index
    %c0_0 = arith.constant 0 : index
    %0 = vector.load %arg1[%c0, %c0_0] : memref<16x32xf32, #tpu.memory_space<vmem>>, vector<16x32xf32>
    %cst = arith.constant dense<0.000000e+00> : vector<16xf32>
    %1 = vector.multi_reduction <add>, %0, %cst [1] : vector<16x32xf32> to vector<16xf32>
    %2 = vector.shape_cast %1 : vector<16xf32> to vector<16x1xf32>
    %cst_1 = arith.constant 3.125000e-02 : f32
    %3 = vector.broadcast %cst_1 : f32 to vector<16x1xf32>
    %4 = arith.mulf %2, %3 : vector<16x1xf32>
    %c0_2 = arith.constant 0 : index
    %c0_3 = arith.constant 0 : index
    %5 = vector.load %arg1[%c0_2, %c0_3] : memref<16x32xf32, #tpu.memory_space<vmem>>, vector<16x32xf32>
    %6 = vector.broadcast %4 : vector<16x1xf32> to vector<16x32xf32>
    %7 = arith.subf %5, %6 : vector<16x32xf32>
    %8 = arith.mulf %7, %7 : vector<16x32xf32>
    %cst_4 = arith.constant dense<0.000000e+00> : vector<16xf32>
    %9 = vector.multi_reduction <add>, %8, %cst_4 [1] : vector<16x32xf32> to vector<16xf32>
    %10 = vector.shape_cast %9 : vector<16xf32> to vector<16x1xf32>
    %cst_5 = arith.constant 0.0322580636 : f32
    %11 = vector.broadcast %cst_5 : f32 to vector<16x1xf32>
    %12 = arith.mulf %10, %11 : vector<16x1xf32>
    %13 = math.sqrt %12 : vector<16x1xf32>
    %cst_6 = arith.constant 9.99999997E-7 : f32
    %14 = vector.broadcast %cst_6 : f32 to vector<16x1xf32>
    %15 = arith.addf %13, %14 : vector<16x1xf32>
    %cst_7 = arith.constant 1.000000e+00 : f32
    %16 = vector.broadcast %cst_7 : f32 to vector<16x1xf32>
    %17 = arith.divf %16, %15 : vector<16x1xf32>
    %c0_8 = arith.constant 0 : index
    %c0_9 = arith.constant 0 : index
    %18 = vector.load %arg1[%c0_8, %c0_9] : memref<16x32xf32, #tpu.memory_space<vmem>>, vector<16x32xf32>
    %19 = vector.broadcast %4 : vector<16x1xf32> to vector<16x32xf32>
    %20 = arith.subf %18, %19 : vector<16x32xf32>
    %21 = vector.broadcast %17 : vector<16x1xf32> to vector<16x32xf32>
    %22 = arith.mulf %20, %21 : vector<16x32xf32>
    %c0_10 = arith.constant 0 : index
    %c0_11 = arith.constant 0 : index
    %23 = vector.load %arg2[%c0_10, %c0_11] : memref<16x32xf32, #tpu.memory_space<vmem>>, vector<16x32xf32>
    tpu.vector_store %arg2[%c0_10, %c0_11], %22 {strides = array<i32>} : memref<16x32xf32, #tpu.memory_space<vmem>>, vector<16x32xf32>,
    return
  }
  func.func @transform_0(%arg0: i32) -> (i32, i32) {
    %c0_i32 = arith.constant 0 : i32
    %c0_i32_0 = arith.constant 0 : i32
    return %arg0, %c0_i32 : i32, i32
  }
  func.func @transform_1(%arg0: i32) -> (i32, i32) {
    %c0_i32 = arith.constant 0 : i32
    %c0_i32_0 = arith.constant 0 : i32
    return %arg0, %c0_i32 : i32, i32
  }
}

</mosaic_0001>

<llo_original>
// kernel: tpu_custom_call.1
$region0: #{tpu_custom_call.1}
  #allocation0 [shape = 'u32[]', space=smem, size = 0x4, offset = 0x4, fixed_abs, tag = 'smem constant byte address 0x4 - core index']
  #allocation1 [shape = 'u32[144,128]{1,0:T(1,128)}', space=vmem, size = 0x12000, scoped, tag = 'internal scratch']
  %s0 = inlined_call_operand.hbm [shape: f32[16,32], index: 0, kind: input, shape index: {}]
  %s1 = inlined_call_operand.hbm [shape: f32[16,32], index: 1, kind: output, shape index: {}]
  %s2 = sld [smem:[#allocation0]]
  $region18: #{tpu_custom_call.1} parent=0
    _
  %s4 = ssub.s32 1, %s2
  %s5 = scalar_select 0, %s4, %s2
  $region1: #{tpu_custom_call.1} parent=0
    #allocation2 [shape = 'u8[8192]{0}', space=vmem, size = 0x2000, scoped, tag = 'input window, operand 0, single buffered']
    #allocation3 [shape = 's32[1]{0}', space=sflag, size = 0x4, scoped, tag = 'scoped memory for tpu_custom_call.1']
    #allocation4 [shape = 's32[1]{0}', space=sflag, size = 0x4, scoped, tag = 'scoped memory for tpu_custom_call.1']
    #allocation5 [shape = 'u8[8192]{0}', space=vmem, size = 0x2000, scoped, tag = 'output window, operand 0, single buffered']
    %6 = vsyncpa [#allocation3], 0
    %7 = vsyncpa [#allocation4], 0
    // Predicated region
    $region2: #{tpu_custom_call.1} parent=1 // pred_check
      _
    $region3: #{tpu_custom_call.1} parent=1 // pred_check_branch
      %9 = sbr.rel (0) target = $region5
    $region4: #{tpu_custom_call.1} parent=1 // pred_region
      %s11 = ssub.s32 256, 256
      %12 = vsyncadd [#allocation3], %s11
      %s13 = sshll.u32 [#allocation2], 4
      %s14 = int_to_ptr.vmem [resolvable:$true] %s13
      %19 = dma.hbm_to_vmem [thread:$0]  %s0, 256, %s14, [#allocation3], 128, 128, 8
    $region5: #{tpu_custom_call.1} parent=1 // pred_fallthru
      _
    // Predicated region
    $region6: #{tpu_custom_call.1} parent=1 // pred_check
      _
    $region7: #{tpu_custom_call.1} parent=1 // pred_check_branch
      %21 = sbr.rel (0) target = $region9
    $region8: #{tpu_custom_call.1} parent=1 // pred_region
      %22 = dma.done [#allocation3], 256
    $region9: #{tpu_custom_call.1} parent=1 // pred_fallthru
      _
    %v23 = vld [vmem:[#allocation2] sm:$0xff]
    %v24 = vld [vmem:[#allocation2 + $0x8] sm:$0xff]
    %vm25 = vcmask 261120
    %v26 = vsel %vm25, %v23, 0.0
    %27 = vadd.xlane.f32.xlu0 %v26
    %v28 = vpop.xlane.xlu0 %27
    %v29 = vsel %vm25, %v24, 0.0
    %30 = vadd.xlane.f32.xlu0 %v29
    %v31 = vpop.xlane.xlu0 %30
    %v32 = vmul.f32 %v28, 0.03125
    %v33 = vmul.f32 %v31, 0.03125
    %v34 = vsub.f32 %v23, %v32
    %v35 = vsub.f32 %v24, %v33
    %v36 = vmul.f32 %v34, %v34
    %v37 = vmul.f32 %v35, %v35
    %v38 = vsel %vm25, %v36, 0.0
    %39 = vadd.xlane.f32.xlu0 %v38
    %v40 = vpop.xlane.xlu0 %39
    %v41 = vsel %vm25, %v37, 0.0
    %42 = vadd.xlane.f32.xlu0 %v41
    %v43 = vpop.xlane.xlu0 %42
    %v44 = vmul.f32 %v40, 0.032258064
    %v45 = vmul.f32 %v43, 0.032258064
    %v46 = vrsqrt.pop %v44
    %v47 = vmul.f32 %v44, %v46
    %vm48 = vcmp.eq.f32.partialorder %v44, inf
    %v49 = vsel %vm48, %v44, %v47
    %vm50 = vcmp.eq.f32.partialorder %v44, 0.0
    %v51 = vand.u32 %v44, 2147483648
    %v52 = vsel %vm50, %v51, %v49
    %v53 = vrsqrt.pop %v45
    %v54 = vmul.f32 %v45, %v53
    %vm55 = vcmp.eq.f32.partialorder %v45, inf
    %v56 = vsel %vm55, %v45, %v54
    %vm57 = vcmp.eq.f32.partialorder %v45, 0.0
    %v58 = vand.u32 %v45, 2147483648
    %v59 = vsel %vm57, %v58, %v56
    %v60 = vadd.f32 %v52, 1e-06
    %v61 = vadd.f32 %v59, 1e-06
    %v62 = vrcp.pop %v60
    %v63 = vmul.f32 1.0, %v62
    %v64 = vrcp.pop %v61
    %v65 = vmul.f32 1.0, %v64
    %v66 = vmul.f32 %v34, %v63
    %v67 = vmul.f32 %v35, %v65
    %68 = vst.msk [vmem:[#allocation5] sm:$0xff] %vm25, %v66
    %69 = vst.msk [vmem:[#allocation5 + $0x8] sm:$0xff] %vm25, %v67
    // Predicated region
    $region10: #{tpu_custom_call.1} parent=1 // pred_check
      _
    $region11: #{tpu_custom_call.1} parent=1 // pred_check_branch
      %71 = sbr.rel (0) target = $region13
    $region12: #{tpu_custom_call.1} parent=1 // pred_region
      %s73 = ssub.s32 256, 256
      %74 = vsyncadd [#allocation4], %s73
      %s75 = sshll.u32 [#allocation5], 4
      %s76 = int_to_ptr.vmem [resolvable:$true] %s75
      %81 = dma.vmem_to_hbm [thread:$0]  %s76, 256, %s1, [#allocation4], 128, 128, 8
    $region13: #{tpu_custom_call.1} parent=1 // pred_fallthru
      _
    // Predicated region
    $region14: #{tpu_custom_call.1} parent=1 // pred_check
      _
    $region15: #{tpu_custom_call.1} parent=1 // pred_check_branch
      %83 = sbr.rel (0) target = $region17
    $region16: #{tpu_custom_call.1} parent=1 // pred_region
      %84 = dma.done [#allocation4], 256
    $region17: #{tpu_custom_call.1} parent=1 // pred_fallthru
      _
    %85 = vsyncpa [#allocation3], 1
    %86 = vsyncpa [#allocation4], 1

</llo_original>
